<compile_context>
chip_gen: v6e
topology: v6e:2x2x1
jax: 0.10.0
libtpu: 0.0.40
codegen_flags: <defaults>
</compile_context>

<pallas_src>
import jax
import jax.numpy as jnp
from jax import lax
from jax.experimental import pallas as pl
from jax.experimental.pallas import tpu as pltpu

J = 8          # number of locations (bmm batch dim and row/col dim of output)
K = 128        # feature/hidden dim (wt1 last dim == wt2 middle dim)
totalR = 1000.0


def priprob_kernel(r_ref, wt1_ref, wt2_ref, fdist_ref, out_ref):
    # ---- candidate-invariant loads & broadcasts, hoisted out of the loop ----
    fd = fdist_ref[...]                                              # (J, J, K)  8 vregs
    wt1b = jnp.broadcast_to(wt1_ref[...][:, None, :], (J, J, K))     # 8 vregs, resident
    wt2b = jnp.broadcast_to(wt2_ref[...][:, None, :], (J, J, K))     # 8 vregs, resident

    nrb = r_ref.shape[0]   # static (block leading dim)

    # ---- per-candidate loop: caps live vregs at ~16, no spills --------------
    def body(n, carry):
        # rn: (J, 1) with the J values already on the sublane axis; the lane
        # broadcast against K inside the multiply is a single cheap XLU op.
        rn = r_ref[n]                                                # (J, 1)
        # res[b, i, k] = R[n, i] * wt1[b, k] + F_DIST_w1[b, i, k], then relu.
        res = jnp.maximum(rn[None, :, :] * wt1b + fd, 0.0)           # (J, J, K)
        # scores[b, i] = sum_k res[b, i, k] * wt2[b, k]   (VPU mul + XLU reduce)
        scores = jnp.sum(res * wt2b, axis=-1)                        # (J, J)
        # softmax over i  ==  PyTorch .view(-1, J) + softmax(dim=1)
        m = jnp.max(scores, axis=-1, keepdims=True)
        e = jnp.exp(scores - m)
        denom = jnp.sum(e, axis=-1, keepdims=True)
        out_ref[n] = (e / denom).astype(out_ref.dtype)               # exact divide
        return carry

    lax.fori_loop(0, nrb, body, 0)


def priprob_forward_batched(R_batch, wt1, wt2, F_DIST_w1, nrb=128):
    """Evaluate the PriProb forward pass for NR candidate reward vectors.

    R_batch:   (NR, J)      candidate reward vectors
    wt1:       (J, 1, K)    PyTorch-shaped weight (squeezed internally)
    wt2:       (J, K, 1)    PyTorch-shaped weight (squeezed internally)
    F_DIST_w1: (J, J, K)    constant bias term
    returns:   (NR, J, J)   out[n, b, i] = softmax_i of the scores for candidate n
    """
    NR = R_batch.shape[0]
    # Big nrb amortizes the fixed per-grid-step cost, but keep >= 2 grid steps
    # whenever NR >= 2 so the 'parallel' candidate axis can use both TCs (v7x).
    if NR >= 2:
        nrb = max(1, min(nrb, pl.cdiv(NR, 2)))
    else:
        nrb = 1
    NR_pad = pl.cdiv(NR, nrb) * nrb
    if NR_pad != NR:
        R_batch = jnp.concatenate(
            [R_batch, jnp.zeros((NR_pad - NR, J), R_batch.dtype)], axis=0)

    # Layout glue (free XLA reshapes outside the kernel).  R as (NR, J, 1)
    # puts each candidate's J values on the sublane axis inside the kernel.
    R3 = R_batch.reshape(NR_pad, J, 1).astype(jnp.float32)
    wt1_2d = wt1.reshape(J, K).astype(jnp.float32)
    wt2_2d = wt2.reshape(J, K).astype(jnp.float32)
    fd = F_DIST_w1.astype(jnp.float32)

    out = pl.pallas_call(
        priprob_kernel,
        out_shape=jax.ShapeDtypeStruct((NR_pad, J, J), jnp.float32),
        grid=(NR_pad // nrb,),
        in_specs=[
            pl.BlockSpec((nrb, J, 1), lambda n: (n, 0, 0)),   # per-step R block
            pl.BlockSpec((J, K), lambda n: (0, 0)),           # resident across grid
            pl.BlockSpec((J, K), lambda n: (0, 0)),           # resident across grid
            pl.BlockSpec((J, J, K), lambda n: (0, 0, 0)),     # resident across grid
        ],
        out_specs=pl.BlockSpec((nrb, J, J), lambda n: (n, 0, 0)),
        compiler_params=pltpu.CompilerParams(
            dimension_semantics=("parallel",)),               # shards across TCs on v7x
    )(R3, wt1_2d, wt2_2d, fd)
    return out[:NR]


def priprob_forward(R, wt1, wt2, F_DIST_w1):
    """Module-faithful single-R forward: R is the nn.Parameter of shape (1, J)."""
    return priprob_forward_batched(R.reshape(1, J), wt1, wt2, F_DIST_w1)[0]


def priprob_reference(R_row, wt1, wt2, F_DIST_w1):
    """Pure-JAX reference of the PyTorch forward for one reward vector (J,)."""
    repeatedR = jnp.tile(R_row.reshape(1, J), (J, 1))[:, :, None]     # (J, J, 1)
    res = jnp.einsum("bij,bjk->bik", repeatedR, wt1) + F_DIST_w1      # (J, J, K)
    res = jnp.maximum(res, 0.0)
    res = jnp.einsum("bik,bkj->bij", res, wt2).reshape(-1, J)         # (J, J)
    return jax.nn.softmax(res, axis=1)


if __name__ == "__main__":
    key = jax.random.PRNGKey(0)
    k_r, k_rb, k_rp, k_w1, k_w2, k_fd = jax.random.split(key, 6)

    # Deterministic stand-in for np.random.multinomial(totalR, [1/J]*J, size=1)
    # followed by ad.normalize(r, using_max=False) (divide by the sum).
    # TODO(synk): the original host-side multinomial parameter init has no
    # in-kernel equivalent; it is reproduced deterministically here.
    props = jax.random.uniform(k_r, (J,), dtype=jnp.float32) + 0.1
    counts = jnp.floor(props / jnp.sum(props) * totalR)
    R = (counts / jnp.sum(counts)).reshape(1, J).astype(jnp.float32)   # nn.Parameter (1, J)

    # forward() inputs, PyTorch shapes: wt1 (J,1,K), wt2 (J,K,1), F_DIST_w1 (J,J,K)
    wt1 = jax.random.normal(k_w1, (J, 1, K), dtype=jnp.float32)
    wt2 = jax.random.normal(k_w2, (J, K, 1), dtype=jnp.float32)
    F_DIST_w1 = jax.random.normal(k_fd, (J, J, K), dtype=jnp.float32)

    # ---- module-faithful single-R forward --------------------------------
    out = jax.block_until_ready(priprob_forward(R, wt1, wt2, F_DIST_w1))
    ref = priprob_reference(R.reshape(J), wt1, wt2, F_DIST_w1)
    assert out.shape == (J, J)
    assert bool(jnp.allclose(out, ref, atol=1e-3, rtol=1e-3)), "single-R mismatch vs reference"
    assert bool(jnp.allclose(jnp.sum(out, axis=1), 1.0, atol=1e-3)), "rows must sum to 1"

    # ---- batched candidate-R forward (amortizes launch overhead) ---------
    NR = 32
    props_b = jax.random.uniform(k_rb, (NR, J), dtype=jnp.float32) + 0.1
    R_batch = props_b / jnp.sum(props_b, axis=1, keepdims=True)
    out_b = jax.block_until_ready(
        priprob_forward_batched(R_batch, wt1, wt2, F_DIST_w1))
    ref_b = jax.vmap(lambda r: priprob_reference(r, wt1, wt2, F_DIST_w1))(R_batch)
    assert out_b.shape == (NR, J, J)
    assert bool(jnp.allclose(out_b, ref_b, atol=1e-3, rtol=1e-3)), "batched mismatch vs reference"
    assert bool(jnp.allclose(jnp.sum(out_b, axis=2), 1.0, atol=1e-3)), "rows must sum to 1"

    # ---- ragged NR (exercises the candidate padding path) ----------------
    NRp = 5
    props_p = jax.random.uniform(k_rp, (NRp, J), dtype=jnp.float32) + 0.1
    R_p = props_p / jnp.sum(props_p, axis=1, keepdims=True)
    out_p = jax.block_until_ready(
        priprob_forward_batched(R_p, wt1, wt2, F_DIST_w1))
    ref_p = jax.vmap(lambda r: priprob_reference(r, wt1, wt2, F_DIST_w1))(R_p)
    assert out_p.shape == (NRp, J, J)
    assert bool(jnp.allclose(out_p, ref_p, atol=1e-3, rtol=1e-3)), "padded-NR mismatch vs reference"

    print("KERNEL_OK")
</pallas_src>

<mosaic_0001>
module attributes {stable_mosaic.version = 11 : i64} {
  func.func @priprob_kernel(%arg0: i32, %arg1: memref<1x8x1xf32, #tpu.memory_space<vmem>>, %arg2: memref<8x128xf32, #tpu.memory_space<vmem>>, %arg3: memref<8x128xf32, #tpu.memory_space<vmem>>, %arg4: memref<8x8x128xf32, #tpu.memory_space<vmem>>, %arg5: memref<1x8x8xf32, #tpu.memory_space<vmem>>) attributes {dimension_semantics = [#tpu.dimension_semantics<parallel>], iteration_bounds = array<i64: 1>, scalar_prefetch = 0 : i64, scratch_operands = 0 : i64, tpu.core_type = #tpu.core_type<tc>, window_params = [{transform_indices = @transform_0, window_bounds = array<i64: 1, 8, 1>}, {pipeline_mode = #tpu.pipeline_mode<synchronous>, transform_indices = @transform_1, window_bounds = array<i64: 8, 128>}, {pipeline_mode = #tpu.pipeline_mode<synchronous>, transform_indices = @transform_2, window_bounds = array<i64: 8, 128>}, {pipeline_mode = #tpu.pipeline_mode<synchronous>, transform_indices = @transform_3, window_bounds = array<i64: 8, 8, 128>}, {transform_indices = @transform_4, window_bounds = array<i64: 1, 8, 8>}]} {
    %c0 = arith.constant 0 : index
    %c0_0 = arith.constant 0 : index
    %c0_1 = arith.constant 0 : index
    %0 = vector.load %arg4[%c0, %c0_0, %c0_1] : memref<8x8x128xf32, #tpu.memory_space<vmem>>, vector<8x8x128xf32>
    %c0_2 = arith.constant 0 : index
    %c0_3 = arith.constant 0 : index
    %1 = vector.load %arg2[%c0_2, %c0_3] : memref<8x128xf32, #tpu.memory_space<vmem>>, vector<8x128xf32>
    %2 = vector.shape_cast %1 : vector<8x128xf32> to vector<8x1x128xf32>
    %3 = vector.shape_cast %2 : vector<8x1x128xf32> to vector<8x1x128xf32>
    %4 = vector.broadcast %3 : vector<8x1x128xf32> to vector<8x8x128xf32>
    %c0_4 = arith.constant 0 : index
    %c0_5 = arith.constant 0 : index
    %5 = vector.load %arg3[%c0_4, %c0_5] : memref<8x128xf32, #tpu.memory_space<vmem>>, vector<8x128xf32>
    %6 = vector.shape_cast %5 : vector<8x128xf32> to vector<8x1x128xf32>
    %7 = vector.shape_cast %6 : vector<8x1x128xf32> to vector<8x1x128xf32>
    %8 = vector.broadcast %7 : vector<8x1x128xf32> to vector<8x8x128xf32>
    %c0_i32 = arith.constant 0 : i32
    %9 = arith.index_cast %c0_i32 : i32 to index
    %c0_6 = arith.constant 0 : index
    %c0_7 = arith.constant 0 : index
    %10 = vector.load %arg1[%9, %c0_6, %c0_7] : memref<1x8x1xf32, #tpu.memory_space<vmem>>, vector<1x8x1xf32>
    %11 = vector.shape_cast %10 : vector<1x8x1xf32> to vector<8x1xf32>
    %12 = vector.shape_cast %11 : vector<8x1xf32> to vector<1x8x1xf32>
    %13 = vector.broadcast %12 : vector<1x8x1xf32> to vector<8x8x128xf32>
    %14 = arith.mulf %13, %4 : vector<8x8x128xf32>
    %15 = arith.addf %14, %0 : vector<8x8x128xf32>
    %cst = arith.constant 0.000000e+00 : f32
    %16 = vector.broadcast %cst : f32 to vector<8x8x128xf32>
    %17 = arith.maximumf %15, %16 : vector<8x8x128xf32>
    %18 = arith.mulf %17, %8 : vector<8x8x128xf32>
    %cst_8 = arith.constant dense<0.000000e+00> : vector<8x8xf32>
    %19 = vector.multi_reduction <add>, %18, %cst_8 [2] : vector<8x8x128xf32> to vector<8x8xf32>
    %cst_9 = arith.constant dense<0xFF800000> : vector<8xf32>
    %20 = vector.multi_reduction <maximumf>, %19, %cst_9 [1] : vector<8x8xf32> to vector<8xf32>
    %21 = vector.shape_cast %20 : vector<8xf32> to vector<8x1xf32>
    %22 = vector.broadcast %21 : vector<8x1xf32> to vector<8x8xf32>
    %23 = arith.subf %19, %22 : vector<8x8xf32>
    %24 = math.exp %23 : vector<8x8xf32>
    %cst_10 = arith.constant dense<0.000000e+00> : vector<8xf32>
    %25 = vector.multi_reduction <add>, %24, %cst_10 [1] : vector<8x8xf32> to vector<8xf32>
    %26 = vector.shape_cast %25 : vector<8xf32> to vector<8x1xf32>
    %27 = vector.broadcast %26 : vector<8x1xf32> to vector<8x8xf32>
    %28 = arith.divf %24, %27 : vector<8x8xf32>
    %29 = arith.index_cast %c0_i32 : i32 to index
    %c0_11 = arith.constant 0 : index
    %c0_12 = arith.constant 0 : index
    %30 = vector.load %arg5[%29, %c0_11, %c0_12] : memref<1x8x8xf32, #tpu.memory_space<vmem>>, vector<1x8x8xf32>
    %31 = vector.shape_cast %30 : vector<1x8x8xf32> to vector<8x8xf32>
    %32 = vector.shape_cast %28 : vector<8x8xf32> to vector<1x8x8xf32>
    tpu.vector_store %arg5[%29, %c0_11, %c0_12], %32 {strides = array<i32>} : memref<1x8x8xf32, #tpu.memory_space<vmem>>, vector<1x8x8xf32>,
    %c1_i32 = arith.constant 1 : i32
    return
  }
  func.func @transform_0(%arg0: i32) -> (i32, i32, i32) {
    %c0_i32 = arith.constant 0 : i32
    %c0_i32_0 = arith.constant 0 : i32
    %c0_i32_1 = arith.constant 0 : i32
    return %arg0, %c0_i32, %c0_i32_0 : i32, i32, i32
  }
  func.func @transform_1(%arg0: i32) -> (i32, i32) {
    %c0_i32 = arith.constant 0 : i32
    %c0_i32_0 = arith.constant 0 : i32
    %c0_i32_1 = arith.constant 0 : i32
    return %c0_i32, %c0_i32_0 : i32, i32
  }
  func.func @transform_2(%arg0: i32) -> (i32, i32) {
    %c0_i32 = arith.constant 0 : i32
    %c0_i32_0 = arith.constant 0 : i32
    %c0_i32_1 = arith.constant 0 : i32
    return %c0_i32, %c0_i32_0 : i32, i32
  }
  func.func @transform_3(%arg0: i32) -> (i32, i32, i32) {
    %c0_i32 = arith.constant 0 : i32
    %c0_i32_0 = arith.constant 0 : i32
    %c0_i32_1 = arith.constant 0 : i32
    %c0_i32_2 = arith.constant 0 : i32
    return %c0_i32, %c0_i32_0, %c0_i32_1 : i32, i32, i32
  }
  func.func @transform_4(%arg0: i32) -> (i32, i32, i32) {
    %c0_i32 = arith.constant 0 : i32
    %c0_i32_0 = arith.constant 0 : i32
    %c0_i32_1 = arith.constant 0 : i32
    return %arg0, %c0_i32, %c0_i32_0 : i32, i32, i32
  }
}

</mosaic_0001>

<llo_original>
// kernel: tpu_custom_call.1
$region0: #{tpu_custom_call.1}
  #allocation0 [shape = 'u32[]', space=smem, size = 0x4, offset = 0x4, fixed_abs, tag = 'smem constant byte address 0x4 - core index']
  #allocation1 [shape = 'u32[144,128]{1,0:T(1,128)}', space=vmem, size = 0x12000, scoped, tag = 'internal scratch']
  %s0 = inlined_call_operand.vmem [shape: f32[1,8,1], index: 0, kind: input, shape index: {}]
  %s1 = inlined_call_operand.vmem [shape: f32[8,128], index: 1, kind: input, shape index: {}]
  %s2 = inlined_call_operand.hbm [shape: f32[8,128], index: 2, kind: input, shape index: {}]
  %s3 = inlined_call_operand.hbm [shape: f32[8,8,128], index: 3, kind: input, shape index: {}]
  %s4 = inlined_call_operand.hbm [shape: f32[1,8,8], index: 4, kind: output, shape index: {}]
  %s5 = sld [smem:[#allocation0]]
  $region34: #{tpu_custom_call.1} parent=0
    _
  %s7 = ssub.s32 1, %s5
  %s8 = scalar_select 0, %s7, %s5
  $region1: #{tpu_custom_call.1} parent=0
    #allocation2 [shape = 'u8[4096]{0}', space=vmem, size = 0x1000, scoped, tag = 'input window, operand 2, single buffered']
    #allocation3 [shape = 's32[1]{0}', space=sflag, size = 0x4, scoped, tag = 'scoped memory for tpu_custom_call.1']
    #allocation4 [shape = 's32[1]{0}', space=sflag, size = 0x4, scoped, tag = 'scoped memory for tpu_custom_call.1']
    #allocation5 [shape = 'u8[32768]{0}', space=vmem, size = 0x8000, scoped, tag = 'input window, operand 3, single buffered']
    #allocation6 [shape = 's32[1]{0}', space=sflag, size = 0x4, scoped, tag = 'scoped memory for tpu_custom_call.1']
    #allocation7 [shape = 'u8[4096]{0}', space=vmem, size = 0x1000, scoped, tag = 'output window, operand 0, single buffered']
    %9 = vsyncpa [#allocation3], 0
    %10 = vsyncpa [#allocation6], 0
    %11 = vsyncpa [#allocation4], 0
    // Predicated region
    $region2: #{tpu_custom_call.1} parent=1 // pred_check
      _
    $region3: #{tpu_custom_call.1} parent=1 // pred_check_branch
      %13 = sbr.rel (0) target = $region5
    $region4: #{tpu_custom_call.1} parent=1 // pred_region
      _
    $region5: #{tpu_custom_call.1} parent=1 // pred_fallthru
      _
    // Predicated region
    $region6: #{tpu_custom_call.1} parent=1 // pred_check
      _
    $region7: #{tpu_custom_call.1} parent=1 // pred_check_branch
      %15 = sbr.rel (0) target = $region9
    $region8: #{tpu_custom_call.1} parent=1 // pred_region
      _
    $region9: #{tpu_custom_call.1} parent=1 // pred_fallthru
      _
    // Predicated region
    $region10: #{tpu_custom_call.1} parent=1 // pred_check
      _
    $region11: #{tpu_custom_call.1} parent=1 // pred_check_branch
      %17 = sbr.rel (0) target = $region13
    $region12: #{tpu_custom_call.1} parent=1 // pred_region
      %s19 = ssub.s32 128, 128
      %20 = vsyncadd [#allocation3], %s19
      %s22 = sshll.u32 [#allocation2], 4
      %s23 = int_to_ptr.vmem [resolvable:$true] %s22
      %25 = dma.hbm_to_vmem [thread:$0]  %s2, 128, %s23, [#allocation3]
    $region13: #{tpu_custom_call.1} parent=1 // pred_fallthru
      _
    // Predicated region
    $region14: #{tpu_custom_call.1} parent=1 // pred_check
      _
    $region15: #{tpu_custom_call.1} parent=1 // pred_check_branch
      %27 = sbr.rel (0) target = $region17
    $region16: #{tpu_custom_call.1} parent=1 // pred_region
      %s29 = ssub.s32 1024, 1024
      %30 = vsyncadd [#allocation6], %s29
      %s31 = sshll.u32 [#allocation5], 4
      %s32 = int_to_ptr.vmem [resolvable:$true] %s31
      %37 = dma.hbm_to_vmem [thread:$0]  %s3, 1024, %s32, [#allocation6], 128, 128, 8
    $region17: #{tpu_custom_call.1} parent=1 // pred_fallthru
      _
    // Predicated region
    $region18: #{tpu_custom_call.1} parent=1 // pred_check
      _
    $region19: #{tpu_custom_call.1} parent=1 // pred_check_branch
      %39 = sbr.rel (0) target = $region21
    $region20: #{tpu_custom_call.1} parent=1 // pred_region
      %40 = dma.done [#allocation3], 128
    $region21: #{tpu_custom_call.1} parent=1 // pred_fallthru
      _
    // Predicated region
    $region22: #{tpu_custom_call.1} parent=1 // pred_check
      _
    $region23: #{tpu_custom_call.1} parent=1 // pred_check_branch
      %42 = sbr.rel (0) target = $region25
    $region24: #{tpu_custom_call.1} parent=1 // pred_region
      %43 = dma.done [#allocation6], 1024
    $region25: #{tpu_custom_call.1} parent=1 // pred_fallthru
      _
    %v44 = vld [vmem:[#allocation5] sm:$0xff]
    %v45 = vld [vmem:[#allocation5 + $0x8] sm:$0xff]
    %v46 = vld [vmem:[#allocation5 + $0x10] sm:$0xff]
    %v47 = vld [vmem:[#allocation5 + $0x18] sm:$0xff]
    %v48 = vld [vmem:[#allocation5 + $0x20] sm:$0xff]
    %v49 = vld [vmem:[#allocation5 + $0x28] sm:$0xff]
    %v50 = vld [vmem:[#allocation5 + $0x30] sm:$0xff]
    %v51 = vld [vmem:[#allocation5 + $0x38] sm:$0xff]
    %v52 = vld [vmem:[%s1] sm:$0xff]
    %v54 = vcombine.high %v52, %v52
    %v56 = vunpack.c.l.s4 1966171168
    %v57 = vunpack.c.0.s8 %v56
    %v58 = vlaneseq
    %v59 = vshrl.u32 %v58, 7
    %v60 = vsub.s32 %v57, %v59
    %v61 = vrot.slane %v52, %v60
    %v63 = vunpack.c.l.s4 1966171168
    %v64 = vunpack.c.0.s8 %v63
    %v65 = vlaneseq
    %v66 = vshrl.u32 %v65, 7
    %v67 = vsub.s32 %v64, %v66
    %v68 = vrot.slane %v54, %v67
    %v69 = vcombine.high %v61, %v61
    %v70 = vcombine.high %v68, %v68
    %v72 = vunpack.c.l.s4 1966171168
    %v73 = vunpack.c.0.s8 %v72
    %v74 = vlaneseq
    %v75 = vshrl.u32 %v74, 7
    %v76 = vsub.s32 %v73, %v75
    %v77 = vrot.slane %v61, %v76
    %v79 = vunpack.c.l.s4 1966171168
    %v80 = vunpack.c.0.s8 %v79
    %v81 = vlaneseq
    %v82 = vshrl.u32 %v81, 7
    %v83 = vsub.s32 %v80, %v82
    %v84 = vrot.slane %v68, %v83
    %v86 = vunpack.c.l.s4 1966171168
    %v87 = vunpack.c.0.s8 %v86
    %v88 = vlaneseq
    %v89 = vshrl.u32 %v88, 7
    %v90 = vsub.s32 %v87, %v89
    %v91 = vrot.slane %v69, %v90
    %v93 = vunpack.c.l.s4 1966171168
    %v94 = vunpack.c.0.s8 %v93
    %v95 = vlaneseq
    %v96 = vshrl.u32 %v95, 7
    %v97 = vsub.s32 %v94, %v96
    %v98 = vrot.slane %v70, %v97
    %v99 = vcombine.high %v77, %v77
    %v100 = vcombine.high %v84, %v84
    %v101 = vcombine.high %v91, %v91
    %v102 = vcombine.high %v98, %v98
    %v103 = vlaneseq
    %v104 = vshrl.u32 %v103, 7
    %v105 = vsub.s32 0, %v104
    %v106 = vrot.slane %v77, %v105
    %v107 = vlaneseq
    %v108 = vshrl.u32 %v107, 7
    %v109 = vsub.s32 0, %v108
    %v110 = vrot.slane %v91, %v109
    %v111 = vlaneseq
    %v112 = vshrl.u32 %v111, 7
    %v113 = vsub.s32 0, %v112
    %v114 = vrot.slane %v99, %v113
    %v115 = vlaneseq
    %v116 = vshrl.u32 %v115, 7
    %v117 = vsub.s32 0, %v116
    %v118 = vrot.slane %v101, %v117
    %v119 = vlaneseq
    %v120 = vshrl.u32 %v119, 7
    %v121 = vsub.s32 0, %v120
    %v122 = vrot.slane %v84, %v121
    %v123 = vlaneseq
    %v124 = vshrl.u32 %v123, 7
    %v125 = vsub.s32 0, %v124
    %v126 = vrot.slane %v98, %v125
    %v127 = vlaneseq
    %v128 = vshrl.u32 %v127, 7
    %v129 = vsub.s32 0, %v128
    %v130 = vrot.slane %v100, %v129
    %v131 = vlaneseq
    %v132 = vshrl.u32 %v131, 7
    %v133 = vsub.s32 0, %v132
    %v134 = vrot.slane %v102, %v133
    %v143 = vld [vmem:[#allocation2] sm:$0xff]
    %v145 = vcombine.high %v143, %v143
    %v147 = vunpack.c.l.s4 1966171168
    %v148 = vunpack.c.0.s8 %v147
    %v149 = vlaneseq
    %v150 = vshrl.u32 %v149, 7
    %v151 = vsub.s32 %v148, %v150
    %v152 = vrot.slane %v143, %v151
    %v154 = vunpack.c.l.s4 1966171168
    %v155 = vunpack.c.0.s8 %v154
    %v156 = vlaneseq
    %v157 = vshrl.u32 %v156, 7
    %v158 = vsub.s32 %v155, %v157
    %v159 = vrot.slane %v145, %v158
    %v160 = vcombine.high %v152, %v152
    %v161 = vcombine.high %v159, %v159
    %v163 = vunpack.c.l.s4 1966171168
    %v164 = vunpack.c.0.s8 %v163
    %v165 = vlaneseq
    %v166 = vshrl.u32 %v165, 7
    %v167 = vsub.s32 %v164, %v166
    %v168 = vrot.slane %v152, %v167
    %v170 = vunpack.c.l.s4 1966171168
    %v171 = vunpack.c.0.s8 %v170
    %v172 = vlaneseq
    %v173 = vshrl.u32 %v172, 7
    %v174 = vsub.s32 %v171, %v173
    %v175 = vrot.slane %v159, %v174
    %v177 = vunpack.c.l.s4 1966171168
    %v178 = vunpack.c.0.s8 %v177
    %v179 = vlaneseq
    %v180 = vshrl.u32 %v179, 7
    %v181 = vsub.s32 %v178, %v180
    %v182 = vrot.slane %v160, %v181
    %v184 = vunpack.c.l.s4 1966171168
    %v185 = vunpack.c.0.s8 %v184
    %v186 = vlaneseq
    %v187 = vshrl.u32 %v186, 7
    %v188 = vsub.s32 %v185, %v187
    %v189 = vrot.slane %v161, %v188
    %v190 = vcombine.high %v168, %v168
    %v191 = vcombine.high %v175, %v175
    %v192 = vcombine.high %v182, %v182
    %v193 = vcombine.high %v189, %v189
    %v194 = vlaneseq
    %v195 = vshrl.u32 %v194, 7
    %v196 = vsub.s32 0, %v195
    %v197 = vrot.slane %v168, %v196
    %v198 = vlaneseq
    %v199 = vshrl.u32 %v198, 7
    %v200 = vsub.s32 0, %v199
    %v201 = vrot.slane %v182, %v200
    %v202 = vlaneseq
    %v203 = vshrl.u32 %v202, 7
    %v204 = vsub.s32 0, %v203
    %v205 = vrot.slane %v190, %v204
    %v206 = vlaneseq
    %v207 = vshrl.u32 %v206, 7
    %v208 = vsub.s32 0, %v207
    %v209 = vrot.slane %v192, %v208
    %v210 = vlaneseq
    %v211 = vshrl.u32 %v210, 7
    %v212 = vsub.s32 0, %v211
    %v213 = vrot.slane %v175, %v212
    %v214 = vlaneseq
    %v215 = vshrl.u32 %v214, 7
    %v216 = vsub.s32 0, %v215
    %v217 = vrot.slane %v189, %v216
    %v218 = vlaneseq
    %v219 = vshrl.u32 %v218, 7
    %v220 = vsub.s32 0, %v219
    %v221 = vrot.slane %v191, %v220
    %v222 = vlaneseq
    %v223 = vshrl.u32 %v222, 7
    %v224 = vsub.s32 0, %v223
    %v225 = vrot.slane %v193, %v224
    %v234 = vld [vmem:[%s0] sm:$0xff]
    %236 = vset.pattern.permute.xlu0 0
    %237 = vperm.xlu0 %236, %v234
    %v238 = vpop.permute.xlu0 %237
    %v240 = vmul.f32 %v238, %v106
    %v241 = vmul.f32 %v238, %v110
    %v242 = vmul.f32 %v238, %v114
    %v243 = vmul.f32 %v238, %v118
    %v244 = vmul.f32 %v238, %v122
    %v245 = vmul.f32 %v238, %v126
    %v246 = vmul.f32 %v238, %v130
    %v247 = vmul.f32 %v238, %v134
    %v248 = vadd.f32 %v240, %v44
    %v249 = vadd.f32 %v241, %v45
    %v250 = vadd.f32 %v242, %v46
    %v251 = vadd.f32 %v243, %v47
    %v252 = vadd.f32 %v244, %v48
    %v253 = vadd.f32 %v245, %v49
    %v254 = vadd.f32 %v246, %v50
    %v255 = vadd.f32 %v247, %v51
    %v256 = vmax.f32 %v248, 0.0
    %v257 = vmax.f32 %v249, 0.0
    %v258 = vmax.f32 %v250, 0.0
    %v259 = vmax.f32 %v251, 0.0
    %v260 = vmax.f32 %v252, 0.0
    %v261 = vmax.f32 %v253, 0.0
    %v262 = vmax.f32 %v254, 0.0
    %v263 = vmax.f32 %v255, 0.0
    %v264 = vmul.f32 %v256, %v197
    %v265 = vmul.f32 %v257, %v201
    %v266 = vmul.f32 %v258, %v205
    %v267 = vmul.f32 %v259, %v209
    %v268 = vmul.f32 %v260, %v213
    %v269 = vmul.f32 %v261, %v217
    %v270 = vmul.f32 %v262, %v221
    %v271 = vmul.f32 %v263, %v225
    %272 = vadd.xlane.f32.xlu0 %v264
    %v273 = vpop.xlane.xlu0 %272
    %274 = vadd.xlane.f32.xlu0 %v265
    %v275 = vpop.xlane.xlu0 %274
    %276 = vadd.xlane.f32.xlu0 %v266
    %v277 = vpop.xlane.xlu0 %276
    %278 = vadd.xlane.f32.xlu0 %v267
    %v279 = vpop.xlane.xlu0 %278
    %280 = vadd.xlane.f32.xlu0 %v268
    %v281 = vpop.xlane.xlu0 %280
    %282 = vadd.xlane.f32.xlu0 %v269
    %v283 = vpop.xlane.xlu0 %282
    %284 = vadd.xlane.f32.xlu0 %v270
    %v285 = vpop.xlane.xlu0 %284
    %286 = vadd.xlane.f32.xlu0 %v271
    %v287 = vpop.xlane.xlu0 %286
    %v296 = vlaneseq
    %v297 = vand.u32 %v296, 127
    %v298 = vlaneseq
    %v299 = vshrl.u32 %v298, 7
    %v300 = vsub.s32 %v297, %v299
    %v301 = vrot.slane %v273, %v300
    %v302 = vlaneseq
    %v303 = vshrl.u32 %v302, 7
    %v304 = vsub.s32 %v297, %v303
    %v305 = vrot.slane %v275, %v304
    %v306 = vlaneseq
    %v307 = vshrl.u32 %v306, 7
    %v308 = vsub.s32 %v297, %v307
    %v309 = vrot.slane %v277, %v308
    %v310 = vlaneseq
    %v311 = vshrl.u32 %v310, 7
    %v312 = vsub.s32 %v297, %v311
    %v313 = vrot.slane %v279, %v312
    %v314 = vlaneseq
    %v315 = vshrl.u32 %v314, 7
    %v316 = vsub.s32 %v297, %v315
    %v317 = vrot.slane %v281, %v316
    %v318 = vlaneseq
    %v319 = vshrl.u32 %v318, 7
    %v320 = vsub.s32 %v297, %v319
    %v321 = vrot.slane %v283, %v320
    %v322 = vlaneseq
    %v323 = vshrl.u32 %v322, 7
    %v324 = vsub.s32 %v297, %v323
    %v325 = vrot.slane %v285, %v324
    %v326 = vlaneseq
    %v327 = vshrl.u32 %v326, 7
    %v328 = vsub.s32 %v297, %v327
    %v329 = vrot.slane %v287, %v328
    %vm330 = vcmask 1041409
    %v331 = vsel %vm330, %v305, %v301
    %vm332 = vcmask 1042434
    %v333 = vsel %vm332, %v309, %v331
    %vm334 = vcmask 1043459
    %v335 = vsel %vm334, %v313, %v333
    %vm336 = vcmask 1044484
    %v337 = vsel %vm336, %v317, %v335
    %vm338 = vcmask 1045509
    %v339 = vsel %vm338, %v321, %v337
    %vm340 = vcmask 1046534
    %v341 = vsel %vm340, %v325, %v339
    %vm342 = vcmask 1047559
    %v343 = vsel %vm342, %v329, %v341
    %vm345 = vcmask 64512
    %v346 = vsel %vm345, %v343, -inf
    %347 = vmax.xlane.f32.xlu0 %v346
    %v348 = vpop.xlane.xlu0 %347
    %v350 = vlaneseq
    %v351 = vshrl.u32 %v350, 7
    %v352 = vsub.s32 0, %v351
    %v353 = vrot.slane %v348, %v352
    %v354 = vlaneseq
    %v355 = vshrl.u32 %v354, 7
    %v356 = vsub.s32 1, %v355
    %v357 = vrot.slane %v348, %v356
    %v358 = vlaneseq
    %v359 = vshrl.u32 %v358, 7
    %v360 = vsub.s32 2, %v359
    %v361 = vrot.slane %v348, %v360
    %v362 = vlaneseq
    %v363 = vshrl.u32 %v362, 7
    %v364 = vsub.s32 3, %v363
    %v365 = vrot.slane %v348, %v364
    %v366 = vlaneseq
    %v367 = vshrl.u32 %v366, 7
    %v368 = vsub.s32 4, %v367
    %v369 = vrot.slane %v348, %v368
    %v370 = vlaneseq
    %v371 = vshrl.u32 %v370, 7
    %v372 = vsub.s32 5, %v371
    %v373 = vrot.slane %v348, %v372
    %v374 = vlaneseq
    %v375 = vshrl.u32 %v374, 7
    %v376 = vsub.s32 6, %v375
    %v377 = vrot.slane %v348, %v376
    %v378 = vlaneseq
    %v379 = vshrl.u32 %v378, 7
    %v380 = vsub.s32 7, %v379
    %v381 = vrot.slane %v348, %v380
    %v390 = vsub.f32 %v273, %v353
    %v391 = vsub.f32 %v275, %v357
    %v392 = vsub.f32 %v277, %v361
    %v393 = vsub.f32 %v279, %v365
    %v394 = vsub.f32 %v281, %v369
    %v395 = vsub.f32 %v283, %v373
    %v396 = vsub.f32 %v285, %v377
    %v397 = vsub.f32 %v287, %v381
    %v398 = vmul.f32 %v390, 1.442695
    %v399 = vpow.pop %v398
    %v400 = vmul.f32 %v391, 1.442695
    %v401 = vpow.pop %v400
    %v402 = vmul.f32 %v392, 1.442695
    %v403 = vpow.pop %v402
    %v404 = vmul.f32 %v393, 1.442695
    %v405 = vpow.pop %v404
    %v406 = vmul.f32 %v394, 1.442695
    %v407 = vpow.pop %v406
    %v408 = vmul.f32 %v395, 1.442695
    %v409 = vpow.pop %v408
    %v410 = vmul.f32 %v396, 1.442695
    %v411 = vpow.pop %v410
    %v412 = vmul.f32 %v397, 1.442695
    %v413 = vpow.pop %v412
    %422 = vset.pattern.permute.xlu0 0
    %423 = vperm.xlu0 %422, %v399
    %v424 = vpop.permute.xlu0 %423
    %425 = vset.pattern.permute.xlu0 0
    %426 = vperm.xlu0 %425, %v401
    %v427 = vpop.permute.xlu0 %426
    %428 = vset.pattern.permute.xlu0 0
    %429 = vperm.xlu0 %428, %v403
    %v430 = vpop.permute.xlu0 %429
    %431 = vset.pattern.permute.xlu0 0
    %432 = vperm.xlu0 %431, %v405
    %v433 = vpop.permute.xlu0 %432
    %434 = vset.pattern.permute.xlu0 0
    %435 = vperm.xlu0 %434, %v407
    %v436 = vpop.permute.xlu0 %435
    %437 = vset.pattern.permute.xlu0 0
    %438 = vperm.xlu0 %437, %v409
    %v439 = vpop.permute.xlu0 %438
    %440 = vset.pattern.permute.xlu0 0
    %441 = vperm.xlu0 %440, %v411
    %v442 = vpop.permute.xlu0 %441
    %443 = vset.pattern.permute.xlu0 0
    %444 = vperm.xlu0 %443, %v413
    %v445 = vpop.permute.xlu0 %444
    %v446 = vlaneseq
    %v447 = vshrl.u32 %v446, 7
    %v448 = vsub.s32 %v297, %v447
    %v449 = vrot.slane %v424, %v448
    %v450 = vlaneseq
    %v451 = vshrl.u32 %v450, 7
    %v452 = vsub.s32 %v297, %v451
    %v453 = vrot.slane %v427, %v452
    %v454 = vlaneseq
    %v455 = vshrl.u32 %v454, 7
    %v456 = vsub.s32 %v297, %v455
    %v457 = vrot.slane %v430, %v456
    %v458 = vlaneseq
    %v459 = vshrl.u32 %v458, 7
    %v460 = vsub.s32 %v297, %v459
    %v461 = vrot.slane %v433, %v460
    %v462 = vlaneseq
    %v463 = vshrl.u32 %v462, 7
    %v464 = vsub.s32 %v297, %v463
    %v465 = vrot.slane %v436, %v464
    %v466 = vlaneseq
    %v467 = vshrl.u32 %v466, 7
    %v468 = vsub.s32 %v297, %v467
    %v469 = vrot.slane %v439, %v468
    %v470 = vlaneseq
    %v471 = vshrl.u32 %v470, 7
    %v472 = vsub.s32 %v297, %v471
    %v473 = vrot.slane %v442, %v472
    %v474 = vlaneseq
    %v475 = vshrl.u32 %v474, 7
    %v476 = vsub.s32 %v297, %v475
    %v477 = vrot.slane %v445, %v476
    %v478 = vsel %vm330, %v453, %v449
    %v479 = vsel %vm332, %v457, %v478
    %v480 = vsel %vm334, %v461, %v479
    %v481 = vsel %vm336, %v465, %v480
    %v482 = vsel %vm338, %v469, %v481
    %v483 = vsel %vm340, %v473, %v482
    %v484 = vsel %vm342, %v477, %v483
    %v486 = vsel %vm345, %v484, 0.0
    %487 = vadd.xlane.f32.xlu0 %v486
    %v488 = vpop.xlane.xlu0 %487
    %v490 = vlaneseq
    %v491 = vshrl.u32 %v490, 7
    %v492 = vsub.s32 0, %v491
    %v493 = vrot.slane %v488, %v492
    %v494 = vlaneseq
    %v495 = vshrl.u32 %v494, 7
    %v496 = vsub.s32 1, %v495
    %v497 = vrot.slane %v488, %v496
    %v498 = vlaneseq
    %v499 = vshrl.u32 %v498, 7
    %v500 = vsub.s32 2, %v499
    %v501 = vrot.slane %v488, %v500
    %v502 = vlaneseq
    %v503 = vshrl.u32 %v502, 7
    %v504 = vsub.s32 3, %v503
    %v505 = vrot.slane %v488, %v504
    %v506 = vlaneseq
    %v507 = vshrl.u32 %v506, 7
    %v508 = vsub.s32 4, %v507
    %v509 = vrot.slane %v488, %v508
    %v510 = vlaneseq
    %v511 = vshrl.u32 %v510, 7
    %v512 = vsub.s32 5, %v511
    %v513 = vrot.slane %v488, %v512
    %v514 = vlaneseq
    %v515 = vshrl.u32 %v514, 7
    %v516 = vsub.s32 6, %v515
    %v517 = vrot.slane %v488, %v516
    %v518 = vlaneseq
    %v519 = vshrl.u32 %v518, 7
    %v520 = vsub.s32 7, %v519
    %v521 = vrot.slane %v488, %v520
    %v530 = vrcp.pop %v493
    %v531 = vmul.f32 %v399, %v530
    %v532 = vrcp.pop %v497
    %v533 = vmul.f32 %v401, %v532
    %v534 = vrcp.pop %v501
    %v535 = vmul.f32 %v403, %v534
    %v536 = vrcp.pop %v505
    %v537 = vmul.f32 %v405, %v536
    %v538 = vrcp.pop %v509
    %v539 = vmul.f32 %v407, %v538
    %v540 = vrcp.pop %v513
    %v541 = vmul.f32 %v409, %v540
    %v542 = vrcp.pop %v517
    %v543 = vmul.f32 %v411, %v542
    %v544 = vrcp.pop %v521
    %v545 = vmul.f32 %v413, %v544
    %554 = vset.pattern.permute.xlu0 0
    %555 = vperm.xlu0 %554, %v531
    %v556 = vpop.permute.xlu0 %555
    %557 = vset.pattern.permute.xlu0 0
    %558 = vperm.xlu0 %557, %v533
    %v559 = vpop.permute.xlu0 %558
    %560 = vset.pattern.permute.xlu0 0
    %561 = vperm.xlu0 %560, %v535
    %v562 = vpop.permute.xlu0 %561
    %563 = vset.pattern.permute.xlu0 0
    %564 = vperm.xlu0 %563, %v537
    %v565 = vpop.permute.xlu0 %564
    %566 = vset.pattern.permute.xlu0 0
    %567 = vperm.xlu0 %566, %v539
    %v568 = vpop.permute.xlu0 %567
    %569 = vset.pattern.permute.xlu0 0
    %570 = vperm.xlu0 %569, %v541
    %v571 = vpop.permute.xlu0 %570
    %572 = vset.pattern.permute.xlu0 0
    %573 = vperm.xlu0 %572, %v543
    %v574 = vpop.permute.xlu0 %573
    %575 = vset.pattern.permute.xlu0 0
    %576 = vperm.xlu0 %575, %v545
    %v577 = vpop.permute.xlu0 %576
    %v578 = vlaneseq
    %v579 = vshrl.u32 %v578, 7
    %v580 = vsub.s32 %v297, %v579
    %v581 = vrot.slane %v556, %v580
    %v582 = vlaneseq
    %v583 = vshrl.u32 %v582, 7
    %v584 = vsub.s32 %v297, %v583
    %v585 = vrot.slane %v559, %v584
    %v586 = vlaneseq
    %v587 = vshrl.u32 %v586, 7
    %v588 = vsub.s32 %v297, %v587
    %v589 = vrot.slane %v562, %v588
    %v590 = vlaneseq
    %v591 = vshrl.u32 %v590, 7
    %v592 = vsub.s32 %v297, %v591
    %v593 = vrot.slane %v565, %v592
    %v594 = vlaneseq
    %v595 = vshrl.u32 %v594, 7
    %v596 = vsub.s32 %v297, %v595
    %v597 = vrot.slane %v568, %v596
    %v598 = vlaneseq
    %v599 = vshrl.u32 %v598, 7
    %v600 = vsub.s32 %v297, %v599
    %v601 = vrot.slane %v571, %v600
    %v602 = vlaneseq
    %v603 = vshrl.u32 %v602, 7
    %v604 = vsub.s32 %v297, %v603
    %v605 = vrot.slane %v574, %v604
    %v606 = vlaneseq
    %v607 = vshrl.u32 %v606, 7
    %v608 = vsub.s32 %v297, %v607
    %v609 = vrot.slane %v577, %v608
    %v610 = vsel %vm330, %v585, %v581
    %v611 = vsel %vm332, %v589, %v610
    %v612 = vsel %vm334, %v593, %v611
    %v613 = vsel %vm336, %v597, %v612
    %v614 = vsel %vm338, %v601, %v613
    %v615 = vsel %vm340, %v605, %v614
    %v616 = vsel %vm342, %v609, %v615
    %618 = vst.msk [vmem:[#allocation7] sm:$0xff] %vm345, %v616
    // Predicated region
    $region26: #{tpu_custom_call.1} parent=1 // pred_check
      _
    $region27: #{tpu_custom_call.1} parent=1 // pred_check_branch
      %620 = sbr.rel (0) target = $region29
    $region28: #{tpu_custom_call.1} parent=1 // pred_region
      %s622 = ssub.s32 128, 128
      %623 = vsyncadd [#allocation4], %s622
      %s625 = sshll.u32 [#allocation7], 4
      %s626 = int_to_ptr.vmem [resolvable:$true] %s625
      %628 = dma.vmem_to_hbm [thread:$0]  %s626, 128, %s4, [#allocation4]
    $region29: #{tpu_custom_call.1} parent=1 // pred_fallthru
      _
    // Predicated region
    $region30: #{tpu_custom_call.1} parent=1 // pred_check
      _
    $region31: #{tpu_custom_call.1} parent=1 // pred_check_branch
      %630 = sbr.rel (0) target = $region33
    $region32: #{tpu_custom_call.1} parent=1 // pred_region
      %631 = dma.done [#allocation4], 128
    $region33: #{tpu_custom_call.1} parent=1 // pred_fallthru
      _
    %632 = vsyncpa [#allocation3], 1
    %633 = vsyncpa [#allocation6], 1
    %634 = vsyncpa [#allocation4], 1

</llo_original>
